<compile_context>
chip_gen: v5e
topology: v5e:2x2
jax: 0.10.0
libtpu: 0.0.40
codegen_flags: <defaults>
</compile_context>

<pallas_src>
import jax
import jax.numpy as jnp
from jax import lax
from jax.experimental import pallas as pl
from jax.experimental.pallas import tpu as pltpu


# ---------------------------------------------------------------------------
# In-kernel helpers
# ---------------------------------------------------------------------------
_NT = (((1,), (1,)), ((), ()))   # contract last dims: A @ B.T
_NN = (((1,), (0,)), ((), ()))   # standard A @ B


def _softmax_lanes(s):
    """Numerically stable softmax over the lane (last) axis of a (1, L) tile."""
    m = jnp.max(s, axis=-1, keepdims=True)
    p = jnp.exp(s - m)
    denom = jnp.sum(p, axis=-1, keepdims=True)
    return p * pl.reciprocal(denom, approx=True)   # EUP reciprocal (free slot)


# ---------------------------------------------------------------------------
# Kernels (one grid step == one batch element; all refs are clean 2-D tiles)
# ---------------------------------------------------------------------------
def _dot_kernel(h_ref, e_ref, o_ref):
    # h: (1, H)   e: (L, H)   o: (1, L)
    s = lax.dot_general(h_ref[...], e_ref[...], _NT,
                        preferred_element_type=jnp.float32)          # (1, L) on MXU
    o_ref[...] = _softmax_lanes(s)


def _general_kernel(h_ref, e_ref, w_ref, b_ref, o_ref):
    # h: (1, H)  e: (L, H)  w: (H, H) torch Linear layout (out, in)  b: (1, H)
    # scores[l] = sum_o h[o] * (e[l] @ W.T + b)[o]
    #           = sum_i e[l, i] * (h @ W)[i]  +  h . b
    # -> L-fold FLOP reduction; no (L, H) energy tensor materialized.
    h = h_ref[...]
    hw = lax.dot_general(h, w_ref[...], _NN,
                         preferred_element_type=jnp.float32)          # (1, H)
    s = lax.dot_general(hw, e_ref[...], _NT,
                        preferred_element_type=jnp.float32)           # (1, L)
    # h.b is constant over L (cancels in softmax) but kept for fidelity; 1 vreg.
    s = s + jnp.sum(h * b_ref[...], axis=-1, keepdims=True)
    o_ref[...] = _softmax_lanes(s)


def _concat_kernel(h_ref, e_ref, w_ref, bv_ref, o_ref):
    # h: (1, H)  e: (L, H)  w: (H, 2H)  bv: (2, H) = [bias ; v]  o: (1, L)
    # Linear(cat(h, e)) == h @ W[:, :H].T + e @ W[:, H:].T + b  (cat: hidden first)
    H = h_ref.shape[-1]
    h = h_ref[...]
    e = e_ref[...]
    b = bv_ref[0:1, :]
    v = bv_ref[1:2, :]
    h_term = lax.dot_general(h, w_ref[:, :H], _NT,
                             preferred_element_type=jnp.float32)      # (1, H)
    e_term = lax.dot_general(e, w_ref[:, H:], _NT,
                             preferred_element_type=jnp.float32)      # (L, H)
    energy = jnp.tanh(e_term + h_term + b)                            # (L, H), EUP
    s = lax.dot_general(v, energy, _NT,
                        preferred_element_type=jnp.float32)           # (1, L) on MXU
    o_ref[...] = _softmax_lanes(s)


# ---------------------------------------------------------------------------
# Wrapper
# ---------------------------------------------------------------------------
def _compiler_params():
    if hasattr(pltpu, "CompilerParams"):
        return pltpu.CompilerParams(dimension_semantics=("parallel",))
    return pltpu.TPUCompilerParams(dimension_semantics=("parallel",))  # older jax


def attention_forward(method, params, hidden, encoder_outputs):
    """Pallas version of Attention.forward.

    hidden:          (1, B, H)
    encoder_outputs: (L, B, H)
    returns:         (B, 1, L)  (softmax over L)
    """
    L, B, H = encoder_outputs.shape

    # Free metadata-only reshapes (no HBM transpose round trips):
    #   hidden (1,B,H) -> (B,1,H);  encoder_outputs (L,B,H) -> (L,B,1,H)
    # so per-batch views are selected purely by BlockSpec index_maps while the
    # trailing two dims of every block equal the array dims (tile-legal).
    h = hidden.reshape(B, 1, H)
    e = encoder_outputs.reshape(L, B, 1, H)

    h_spec = pl.BlockSpec((None, 1, H), lambda b: (b, 0, 0))             # kernel: (1, H)
    e_spec = pl.BlockSpec((L, None, None, H), lambda b: (0, b, 0, 0))    # kernel: (L, H)
    out_spec = pl.BlockSpec((None, 1, L), lambda b: (b, 0, 0))           # kernel: (1, L)
    out_shape = jax.ShapeDtypeStruct((B, 1, L), jnp.float32)
    cparams = _compiler_params()

    if method == "dot":
        return pl.pallas_call(
            _dot_kernel, out_shape=out_shape, grid=(B,),
            in_specs=[h_spec, e_spec], out_specs=out_spec,
            compiler_params=cparams,
        )(h, e)

    if method == "general":
        W, b = params["W"], params["b"]
        return pl.pallas_call(
            _general_kernel, out_shape=out_shape, grid=(B,),
            in_specs=[h_spec, e_spec,
                      pl.BlockSpec((H, H), lambda i: (0, 0)),
                      pl.BlockSpec((1, H), lambda i: (0, 0))],
            out_specs=out_spec,
            compiler_params=cparams,
        )(h, e, W, b.reshape(1, H))

    if method == "concat":
        W, b, v = params["W"], params["b"], params["v"]
        bv = jnp.stack([b, v], axis=0)   # pack the two small vectors: one DMA
        return pl.pallas_call(
            _concat_kernel, out_shape=out_shape, grid=(B,),
            in_specs=[h_spec, e_spec,
                      pl.BlockSpec((H, 2 * H), lambda i: (0, 0)),
                      pl.BlockSpec((2, H), lambda i: (0, 0))],
            out_specs=out_spec,
            compiler_params=cparams,
        )(h, e, W, bv)

    raise ValueError("method" + str(method) + "is not defined")


# ---------------------------------------------------------------------------
# Pure-JAX reference (mirrors the PyTorch forward exactly)
# ---------------------------------------------------------------------------
def attention_ref(method, params, hidden, encoder_outputs):
    if method == "dot":
        energies = jnp.sum(hidden * encoder_outputs, axis=2)                 # (L, B)
    elif method == "general":
        energy = encoder_outputs @ params["W"].T + params["b"]
        energies = jnp.sum(hidden * energy, axis=2)
    elif method == "concat":
        h_exp = jnp.broadcast_to(hidden, encoder_outputs.shape)
        cat = jnp.concatenate([h_exp, encoder_outputs], axis=2)              # (L, B, 2H)
        energy = cat @ params["W"].T + params["b"]
        energies = jnp.sum(params["v"] * jnp.tanh(energy), axis=2)
    energies = energies.T                                                    # (B, L)
    return jax.nn.softmax(energies, axis=1)[:, None, :]                      # (B, 1, L)


# ---------------------------------------------------------------------------
# Main
# ---------------------------------------------------------------------------
if __name__ == "__main__":
    B, L, H = 2, 8, 32
    key = jax.random.PRNGKey(0)
    k_h, k_e, k_wg, k_bg, k_wc, k_bc, k_v = jax.random.split(key, 7)

    hidden = jax.random.normal(k_h, (1, B, H), dtype=jnp.float32)
    encoder_outputs = jax.random.normal(k_e, (L, B, H), dtype=jnp.float32)

    # Deterministic parameter init (shapes from torch.nn.Linear in __init__).
    params_by_method = {
        "dot": {},
        "general": {
            "W": jax.random.normal(k_wg, (H, H), dtype=jnp.float32) * 0.1,
            "b": jax.random.normal(k_bg, (H,), dtype=jnp.float32) * 0.1,
        },
        "concat": {
            "W": jax.random.normal(k_wc, (H, 2 * H), dtype=jnp.float32) * 0.1,
            "b": jax.random.normal(k_bc, (H,), dtype=jnp.float32) * 0.1,
            "v": jax.random.normal(k_v, (H,), dtype=jnp.float32) * 0.1,
        },
    }

    ok = True
    for method in ("dot", "general", "concat"):
        params = params_by_method[method]
        out = attention_forward(method, params, hidden, encoder_outputs)
        out = jax.block_until_ready(out)
        ref = attention_ref(method, params, hidden, encoder_outputs)
        if out.shape != (B, 1, L):
            ok = False
        # Tolerance loosened slightly vs exact f32 because of the EUP
        # approximate reciprocal in the softmax denominator.
        if not jnp.allclose(out, ref, atol=5e-3, rtol=5e-3):
            ok = False

    if ok:
        print("KERNEL_OK")
    else:
        print("KERNEL_MISMATCH")
</pallas_src>

<mosaic_0001>
module attributes {stable_mosaic.version = 11 : i64} {
  func.func @_dot_kernel(%arg0: i32, %arg1: memref<1x1x32xf32, #tpu.memory_space<vmem>>, %arg2: memref<8x1x1x32xf32, #tpu.memory_space<vmem>>, %arg3: memref<1x1x8xf32, #tpu.memory_space<vmem>>) attributes {dimension_semantics = [#tpu.dimension_semantics<parallel>], iteration_bounds = array<i64: 2>, scalar_prefetch = 0 : i64, scratch_operands = 0 : i64, tpu.core_type = #tpu.core_type<tc>, window_params = [{transform_indices = @transform_0, window_bounds = array<i64: 1, 1, 32>}, {transform_indices = @transform_1, window_bounds = array<i64: 8, 1, 1, 32>}, {transform_indices = @transform_2, window_bounds = array<i64: 1, 1, 8>}]} {
    %c0 = arith.constant 0 : index
    %c0_0 = arith.constant 0 : index
    %c0_1 = arith.constant 0 : index
    %0 = vector.load %arg1[%c0, %c0_0, %c0_1] : memref<1x1x32xf32, #tpu.memory_space<vmem>>, vector<1x1x32xf32>
    %1 = vector.shape_cast %0 : vector<1x1x32xf32> to vector<1x32xf32>
    %c0_2 = arith.constant 0 : index
    %c0_3 = arith.constant 0 : index
    %c0_4 = arith.constant 0 : index
    %c0_5 = arith.constant 0 : index
    %2 = vector.load %arg2[%c0_2, %c0_3, %c0_4, %c0_5] : memref<8x1x1x32xf32, #tpu.memory_space<vmem>>, vector<8x1x1x32xf32>
    %3 = vector.shape_cast %2 : vector<8x1x1x32xf32> to vector<8x32xf32>
    %cst = arith.constant dense<0.000000e+00> : vector<1x8xf32>
    %4 = tpu.matmul %1, %3, %cst {dimension_numbers = #tpu.dot_dimension_numbers<[1], [1], [0], [0], [0, 0, 1, 0], [], []>} : vector<1x32xf32>, vector<8x32xf32>, vector<1x8xf32> -> vector<1x8xf32>
    %cst_6 = arith.constant dense<0xFF800000> : vector<1xf32>
    %5 = vector.multi_reduction <maximumf>, %4, %cst_6 [1] : vector<1x8xf32> to vector<1xf32>
    %6 = vector.shape_cast %5 : vector<1xf32> to vector<1x1xf32>
    %7 = vector.broadcast %6 : vector<1x1xf32> to vector<1x8xf32>
    %8 = arith.subf %4, %7 : vector<1x8xf32>
    %9 = math.exp %8 : vector<1x8xf32>
    %cst_7 = arith.constant dense<0.000000e+00> : vector<1xf32>
    %10 = vector.multi_reduction <add>, %9, %cst_7 [1] : vector<1x8xf32> to vector<1xf32>
    %11 = vector.shape_cast %10 : vector<1xf32> to vector<1x1xf32>
    %12 = tpu.reciprocal %11 {approx = true} : vector<1x1xf32> -> vector<1x1xf32>
    %13 = vector.broadcast %12 : vector<1x1xf32> to vector<1x8xf32>
    %14 = arith.mulf %9, %13 : vector<1x8xf32>
    %c0_8 = arith.constant 0 : index
    %c0_9 = arith.constant 0 : index
    %c0_10 = arith.constant 0 : index
    %15 = vector.load %arg3[%c0_8, %c0_9, %c0_10] : memref<1x1x8xf32, #tpu.memory_space<vmem>>, vector<1x1x8xf32>
    %16 = vector.shape_cast %15 : vector<1x1x8xf32> to vector<1x8xf32>
    %17 = vector.shape_cast %14 : vector<1x8xf32> to vector<1x1x8xf32>
    tpu.vector_store %arg3[%c0_8, %c0_9, %c0_10], %17 {strides = array<i32>} : memref<1x1x8xf32, #tpu.memory_space<vmem>>, vector<1x1x8xf32>,
    return
  }
  func.func @transform_0(%arg0: i32) -> (i32, i32, i32) {
    %c0_i32 = arith.constant 0 : i32
    %c0_i32_0 = arith.constant 0 : i32
    %c0_i32_1 = arith.constant 0 : i32
    return %arg0, %c0_i32, %c0_i32_0 : i32, i32, i32
  }
  func.func @transform_1(%arg0: i32) -> (i32, i32, i32, i32) {
    %c0_i32 = arith.constant 0 : i32
    %c0_i32_0 = arith.constant 0 : i32
    %c0_i32_1 = arith.constant 0 : i32
    %c0_i32_2 = arith.constant 0 : i32
    return %c0_i32, %arg0, %c0_i32_0, %c0_i32_1 : i32, i32, i32, i32
  }
  func.func @transform_2(%arg0: i32) -> (i32, i32, i32) {
    %c0_i32 = arith.constant 0 : i32
    %c0_i32_0 = arith.constant 0 : i32
    %c0_i32_1 = arith.constant 0 : i32
    return %arg0, %c0_i32, %c0_i32_0 : i32, i32, i32
  }
}

</mosaic_0001>

<llo_original>
// kernel: tpu_custom_call.1
$region0: #{tpu_custom_call.1}
  #allocation0 [shape = 'u32[]', space=smem, size = 0x4, offset = 0x4, fixed_abs, tag = 'smem constant byte address 0x4 - core index']
  #allocation1 [shape = 'u32[72,128]{1,0:T(1,128)}', space=vmem, size = 0x9000, scoped, tag = 'internal scratch']
  %s0 = inlined_call_operand.hbm [shape: f32[2,1,32], index: 0, kind: input, shape index: {}]
  %s1 = inlined_call_operand.hbm [shape: f32[8,2,1,32], index: 1, kind: input, shape index: {}]
  %s2 = inlined_call_operand.hbm [shape: f32[2,1,8], index: 2, kind: output, shape index: {}]
  %s3 = sld [smem:[#allocation0]]
  $region49: #{tpu_custom_call.1} parent=0
    _
  %s5 = ssub.s32 1, %s3
  %s6 = scalar_select 0, %s5, %s3
  $region1: #{tpu_custom_call.1} parent=0
    #allocation2 [shape = 'u8[1024]{0}', space=vmem, size = 0x400, scoped, tag = 'input window, operand 0']
    #allocation3 [shape = 's32[2]{0}', space=sflag, size = 0x8, scoped, tag = 'scoped memory for tpu_custom_call.1']
    #allocation4 [shape = 's32[2]{0}', space=sflag, size = 0x8, scoped, tag = 'scoped memory for tpu_custom_call.1']
    #allocation5 [shape = 'u8[8192]{0}', space=vmem, size = 0x2000, scoped, tag = 'input window, operand 1']
    #allocation6 [shape = 's32[2]{0}', space=sflag, size = 0x8, scoped, tag = 'scoped memory for tpu_custom_call.1']
    #allocation7 [shape = 'u8[1024]{0}', space=vmem, size = 0x400, scoped, tag = 'output window, operand 0']
    %7 = vsyncpa [#allocation3], 0
    %s8 = scalar_lea.sflag [#allocation3], 1
    %9 = vsyncpa %s8, 0
    %10 = vsyncpa [#allocation6], 0
    %s11 = scalar_lea.sflag [#allocation6], 1
    %12 = vsyncpa %s11, 0
    %13 = vsyncpa [#allocation4], 0
    %s14 = scalar_lea.sflag [#allocation4], 1
    %15 = vsyncpa %s14, 0
    loop: start=0, step=1, limit=4
    $region2: #{tpu_custom_call.1} parent=1 // loop_pre_header
      _
    $region3: #{tpu_custom_call.1} parent=1 // loop_header
      %s17 = sphi 0, %s21
      %p18 = scmp.ge.s32.totalorder %s17, 4
      %s27 = sphi 0, %s29
      %s30 = sphi 0, %s27
      %s31 = sphi 0, %s30
      %s47 = sphi 0, %s31
      %s53 = sphi 0, %s55
      %s56 = sphi 0, %s53
      %s57 = sphi 0, %s56
      %s73 = sphi 0, %s57
      %s79 = sphi 0, %s81
      %s82 = sphi 0, %s79
      %s83 = sphi 0, %s82
      %s99 = sphi 0, %s83
    $region4: #{tpu_custom_call.1} parent=1 // loop_header_branch
      %20 = sbr.rel (%p18) target = $region8
    $region5: #{tpu_custom_call.1} parent=1 // loop_body
      %s22 = ssub.s32 %s17, 1
      %s23 = ssub.s32 %s17, 2
      %s24 = sadd.s32 %s17, 1
      %s25 = ssub.s32 %s17, %s24
      %p26 = scmp.eq.s32.totalorder %s25, 0
      %s28 = sadd.s32 %s27, 1
      %s29 = scalar_select %p26, %s27, %s28
      %p32 = pneg %p26
      %p33 = scmp.eq.s32.totalorder %s17, 1
      %p34 = por %p32, %p33
      %p35 = scmp.ne.s32.totalorder %s27, %s30
      %p36 = scmp.eq.s32.totalorder %s17, 0
      %p37 = por %p35, %p36
      %p38 = scmp.ne.s32.totalorder %s27, %s30
      %p39 = scmp.eq.s32.totalorder %s22, 1
      %p40 = por %p38, %p39
      %p41 = scmp.ne.s32.totalorder %s30, %s31
      %p42 = scmp.eq.s32.totalorder %s22, 0
      %p43 = por %p41, %p42
      %p44 = scmp.ne.s32.totalorder %s30, %s31
      %p45 = scmp.eq.s32.totalorder %s23, 1
      %p46 = por %p44, %p45
      %p48 = scmp.ne.s32.totalorder %s31, %s47
      %p49 = scmp.eq.s32.totalorder %s23, 0
      %p50 = por %p48, %p49
      %s51 = ssub.s32 %s17, %s24
      %p52 = scmp.eq.s32.totalorder %s51, 0
      %s54 = sadd.s32 %s53, 1
      %s55 = scalar_select %p52, %s53, %s54
      %p58 = pneg %p52
      %p59 = scmp.eq.s32.totalorder %s17, 1
      %p60 = por %p58, %p59
      %p61 = scmp.ne.s32.totalorder %s53, %s56
      %p62 = scmp.eq.s32.totalorder %s17, 0
      %p63 = por %p61, %p62
      %p64 = scmp.ne.s32.totalorder %s53, %s56
      %p65 = scmp.eq.s32.totalorder %s22, 1
      %p66 = por %p64, %p65
      %p67 = scmp.ne.s32.totalorder %s56, %s57
      %p68 = scmp.eq.s32.totalorder %s22, 0
      %p69 = por %p67, %p68
      %p70 = scmp.ne.s32.totalorder %s56, %s57
      %p71 = scmp.eq.s32.totalorder %s23, 1
      %p72 = por %p70, %p71
      %p74 = scmp.ne.s32.totalorder %s57, %s73
      %p75 = scmp.eq.s32.totalorder %s23, 0
      %p76 = por %p74, %p75
      %s77 = ssub.s32 %s17, %s24
      %p78 = scmp.eq.s32.totalorder %s77, 0
      %s80 = sadd.s32 %s79, 1
      %s81 = scalar_select %p78, %s79, %s80
      %p84 = pneg %p78
      %p85 = scmp.eq.s32.totalorder %s17, 1
      %p86 = por %p84, %p85
      %p87 = scmp.ne.s32.totalorder %s79, %s82
      %p88 = scmp.eq.s32.totalorder %s17, 0
      %p89 = por %p87, %p88
      %p90 = scmp.ne.s32.totalorder %s79, %s82
      %p91 = scmp.eq.s32.totalorder %s22, 1
      %p92 = por %p90, %p91
      %p93 = scmp.ne.s32.totalorder %s82, %s83
      %p94 = scmp.eq.s32.totalorder %s22, 0
      %p95 = por %p93, %p94
      %p96 = scmp.ne.s32.totalorder %s82, %s83
      %p97 = scmp.eq.s32.totalorder %s23, 1
      %p98 = por %p96, %p97
      %p100 = scmp.ne.s32.totalorder %s83, %s99
      %p101 = scmp.eq.s32.totalorder %s23, 0
      %p102 = por %p100, %p101
      %p103 = scmp.le.s32.totalorder 1, %s17
      %p104 = scmp.lt.s32.totalorder %s17, 3
      %p105 = pnand %p103, %p104
      %p106 = pneg %p105
      // Predicated region
      $region9: #{tpu_custom_call.1} parent=5 // pred_check
        _
      $region10: #{tpu_custom_call.1} parent=5 // pred_check_branch
        %108 = sbr.rel (%p105) target = $region12
      $region11: #{tpu_custom_call.1} parent=5 // pred_region
        %s109 = ssub.s32 %s17, 1
      $region12: #{tpu_custom_call.1} parent=5 // pred_fallthru
        _
      %p110 = scmp.lt.s32.totalorder %s17, 2
      // Predicated region
      $region13: #{tpu_custom_call.1} parent=5 // pred_check
        %p111 = pneg %p110
      $region14: #{tpu_custom_call.1} parent=5 // pred_check_branch
        %113 = sbr.rel (%p111) target = $region16
      $region15: #{tpu_custom_call.1} parent=5 // pred_region
        // Predicated region
        $region17: #{tpu_custom_call.1} parent=15 // pred_check
          %p114 = pneg %p37
        $region18: #{tpu_custom_call.1} parent=15 // pred_check_branch
          %116 = sbr.rel (%p114) target = $region20
        $region19: #{tpu_custom_call.1} parent=15 // pred_region
          %s117 = sand.u32 %s27, 1
          %s118 = scalar_lea.sflag [#allocation3], %s117
          %s119 = sand.u32 %s27, 1
          %s120 = scalar_lea.vmem [#allocation2], %s119
          %122 = vsyncadd %s118, 0
          %s123 = scalar_lea.hbm %s0, %s17
          %s125 = sshll.u32 %s123, 4
          %s126 = int_to_ptr.hbm [resolvable:$true] %s125
          %s127 = sshll.u32 %s120, 4
          %s128 = int_to_ptr.vmem [resolvable:$true] %s127
          %130 = dma.hbm_to_vmem [thread:$0]  %s126, 16, %s128, %s118
        $region20: #{tpu_custom_call.1} parent=15 // pred_fallthru
          _
        // Predicated region
        $region21: #{tpu_custom_call.1} parent=15 // pred_check
          %p131 = pneg %p63
        $region22: #{tpu_custom_call.1} parent=15 // pred_check_branch
          %133 = sbr.rel (%p131) target = $region24
        $region23: #{tpu_custom_call.1} parent=15 // pred_region
          %s134 = sand.u32 %s53, 1
          %s135 = scalar_lea.sflag [#allocation6], %s134
          %s136 = sand.u32 %s53, 1
          %s137 = smul.addr %s136, 8
          %s138 = scalar_lea.vmem [#allocation5], %s137
          %140 = vsyncadd %s135, 0
          %s141 = scalar_lea.hbm %s1, %s17
          %s142 = sshll.u32 %s141, 4
          %s143 = int_to_ptr.hbm [resolvable:$true] %s142
          %s144 = sshll.u32 %s138, 4
          %s145 = int_to_ptr.vmem [resolvable:$true] %s144
          %150 = dma.hbm_to_vmem [thread:$0]  %s143, 128, %s145, %s135, 32, 16, 1
        $region24: #{tpu_custom_call.1} parent=15 // pred_fallthru
          _
      $region16: #{tpu_custom_call.1} parent=5 // pred_fallthru
        _
      %p151 = scmp.le.s32.totalorder 1, %s17
      %p152 = scmp.lt.s32.totalorder %s17, 3
      %p153 = pnand %p151, %p152
      %p154 = pneg %p153
      // Predicated region
      $region25: #{tpu_custom_call.1} parent=5 // pred_check
        _
      $region26: #{tpu_custom_call.1} parent=5 // pred_check_branch
        %156 = sbr.rel (%p153) target = $region28
      $region27: #{tpu_custom_call.1} parent=5 // pred_region
        %s157 = ssub.s32 %s17, 1
        %s158 = sand.u32 %s30, 1
        %s159 = scalar_lea.sflag [#allocation3], %s158
        %s160 = sand.u32 %s30, 1
        %s161 = scalar_lea.vmem [#allocation2], %s160
        // Predicated region
        $region29: #{tpu_custom_call.1} parent=27 // pred_check
          %p162 = pneg %p43
        $region30: #{tpu_custom_call.1} parent=27 // pred_check_branch
          %164 = sbr.rel (%p162) target = $region32
        $region31: #{tpu_custom_call.1} parent=27 // pred_region
          %166 = dma.done %s159, 16
        $region32: #{tpu_custom_call.1} parent=27 // pred_fallthru
          _
        %s167 = sand.u32 %s56, 1
        %s168 = scalar_lea.sflag [#allocation6], %s167
        %s169 = sand.u32 %s56, 1
        %s170 = smul.addr %s169, 8
        %s171 = scalar_lea.vmem [#allocation5], %s170
        // Predicated region
        $region33: #{tpu_custom_call.1} parent=27 // pred_check
          %p172 = pneg %p69
        $region34: #{tpu_custom_call.1} parent=27 // pred_check_branch
          %174 = sbr.rel (%p172) target = $region36
        $region35: #{tpu_custom_call.1} parent=27 // pred_region
          %176 = dma.done %s168, 128
        $region36: #{tpu_custom_call.1} parent=27 // pred_fallthru
          _
        %s177 = sand.u32 %s30, 1
        %s178 = scalar_lea.sflag [#allocation3], %s177
        %s179 = sand.u32 %s30, 1
        %s180 = scalar_lea.vmem [#allocation2], %s179
        %p181 = pneg %p43
        %p182 = pneg %p40
        %s183 = sand.u32 %s56, 1
        %s184 = scalar_lea.sflag [#allocation6], %s183
        %s185 = sand.u32 %s56, 1
        %s186 = smul.addr %s185, 8
        %s187 = scalar_lea.vmem [#allocation5], %s186
        %p188 = pneg %p69
        %p189 = pneg %p66
        %p190 = pneg %p95
        %p191 = pneg %p92
        %s192 = sand.u32 %s82, 1
        %s193 = scalar_lea.sflag [#allocation4], %s192
        %s194 = sand.u32 %s82, 1
        %s195 = scalar_lea.vmem [#allocation7], %s194
        %v196 = vld [vmem:[%s161] sm:$0x1]
        %v197 = vld [vmem:[%s171] sm:$0x1]
        %v198 = vld [vmem:[%s171 + $0x1] sm:$0x1]
        %v199 = vld [vmem:[%s171 + $0x2] sm:$0x1]
        %v200 = vld [vmem:[%s171 + $0x3] sm:$0x1]
        %v201 = vld [vmem:[%s171 + $0x4] sm:$0x1]
        %v202 = vld [vmem:[%s171 + $0x5] sm:$0x1]
        %v203 = vld [vmem:[%s171 + $0x6] sm:$0x1]
        %v204 = vld [vmem:[%s171 + $0x7] sm:$0x1]
        %213 = vst [vmem:[#allocation1] ss:$9 sm:$0xff] %v197
        %s214 = scalar_lea.vmem [#allocation1], 1
        %215 = vst [vmem:[%s214] ss:$9 sm:$0xff] %v198
        %s216 = scalar_lea.vmem [#allocation1], 2
        %217 = vst [vmem:[%s216] ss:$9 sm:$0xff] %v199
        %s218 = scalar_lea.vmem [#allocation1], 3
        %219 = vst [vmem:[%s218] ss:$9 sm:$0xff] %v200
        %s220 = scalar_lea.vmem [#allocation1], 4
        %221 = vst [vmem:[%s220] ss:$9 sm:$0xff] %v201
        %s222 = scalar_lea.vmem [#allocation1], 5
        %223 = vst [vmem:[%s222] ss:$9 sm:$0xff] %v202
        %s224 = scalar_lea.vmem [#allocation1], 6
        %225 = vst [vmem:[%s224] ss:$9 sm:$0xff] %v203
        %s226 = scalar_lea.vmem [#allocation1], 7
        %227 = vst [vmem:[%s226] ss:$9 sm:$0xff] %v204
        %v228 = vld [vmem:[#allocation1] sm:$0xff]
        %vm229 = vcmask 261120
        %v231 = vsel %vm229, %v196, 0
        %v233 = vsel %vm229, %v228, 0
        %235 = vmatpush.xpose.msra.mxu0 0.0
        %236 = vmatpush.xpose.msra.mxu0 0.0
        %237 = vmatpush.xpose.msra.mxu0 0.0
        %238 = vmatpush.xpose.msra.mxu0 0.0
        %239 = vmatpush.xpose.msra.mxu0 0.0
        %240 = vmatpush.xpose.msra.mxu0 0.0
        %241 = vmatpush.xpose.msra.mxu0 0.0
        %242 = vmatpush.xpose.msra.mxu0 0.0
        %243 = vmatpush.xpose.msra.mxu0 0.0
        %244 = vmatpush.xpose.msra.mxu0 0.0
        %245 = vmatpush.xpose.msra.mxu0 0.0
        %246 = vmatpush.xpose.msra.mxu0 0.0
        %247 = vmatpush.xpose.msra.mxu0 0.0
        %248 = vmatpush.xpose.msra.mxu0 0.0
        %249 = vmatpush.xpose.msra.mxu0 0.0
        %250 = vmatpush.xpose.msra.mxu0 %v233
        %251 = vmatmul.f32.gmra.mxu0 %v231
        %v252 = vpop.f32.mrf.mxu0
        %v253 = vadd.f32 0.0, %v252
        %254 = vdwg.mxu0
        %vm255 = vcmask 57344
        %v256 = vsel %vm255, %v253, -inf
        %257 = vmax.xlane.f32.xlu0 %v256
        %v258 = vpop.xlane.xlu0 %257
        %v259 = vsub.f32 %v253, %v258
        %v260 = vmul.f32 %v259, 1.442695
        %v261 = vpow.pop %v260
        %v262 = vsel %vm255, %v261, 0.0
        %263 = vadd.xlane.f32.xlu0 %v262
        %v264 = vpop.xlane.xlu0 %263
        %v265 = vrcp.pop %v264
        %v266 = vmul.f32 %v261, %v265
        %267 = vst.msk [vmem:[%s195] sm:$0x1] %vm255, %v266
        %s268 = sand.u32 %s82, 1
        %s269 = scalar_lea.sflag [#allocation4], %s268
        %s270 = sand.u32 %s82, 1
        %s271 = scalar_lea.vmem [#allocation7], %s270
        // Predicated region
        $region37: #{tpu_custom_call.1} parent=27 // pred_check
          %p272 = pneg %p92
        $region38: #{tpu_custom_call.1} parent=27 // pred_check_branch
          %274 = sbr.rel (%p272) target = $region40
        $region39: #{tpu_custom_call.1} parent=27 // pred_region
          %276 = vsyncadd %s269, 0
          %s277 = scalar_lea.hbm %s2, %s22
          %s279 = sshll.u32 %s271, 4
          %s280 = int_to_ptr.vmem [resolvable:$true] %s279
          %s281 = sshll.u32 %s277, 4
          %s282 = int_to_ptr.hbm [resolvable:$true] %s281
          %284 = dma.vmem_to_hbm [thread:$0]  %s280, 16, %s282, %s269
        $region40: #{tpu_custom_call.1} parent=27 // pred_fallthru
          _
      $region28: #{tpu_custom_call.1} parent=5 // pred_fallthru
        _
      %p285 = scmp.le.s32.totalorder 2, %s17
      // Predicated region
      $region41: #{tpu_custom_call.1} parent=5 // pred_check
        %p286 = pneg %p285
      $region42: #{tpu_custom_call.1} parent=5 // pred_check_branch
        %288 = sbr.rel (%p286) target = $region44
      $region43: #{tpu_custom_call.1} parent=5 // pred_region
        %s289 = ssub.s32 %s17, 2
        // Predicated region
        $region45: #{tpu_custom_call.1} parent=43 // pred_check
          %p290 = pneg %p98
        $region46: #{tpu_custom_call.1} parent=43 // pred_check_branch
          %292 = sbr.rel (%p290) target = $region48
        $region47: #{tpu_custom_call.1} parent=43 // pred_region
          %s293 = sand.u32 %s83, 1
          %s294 = scalar_lea.sflag [#allocation4], %s293
          %s295 = sand.u32 %s83, 1
          %s296 = scalar_lea.vmem [#allocation7], %s295
          %298 = dma.done %s294, 16
        $region48: #{tpu_custom_call.1} parent=43 // pred_fallthru
          _
      $region44: #{tpu_custom_call.1} parent=5 // pred_fallthru
        _
    $region6: #{tpu_custom_call.1} parent=1 // loop_footer
      %s21 = sadd.s32 1, %s17
    $region7: #{tpu_custom_call.1} parent=1 // loop_footer_branch
      %16 = sbr.rel target = $region3
    $region8: #{tpu_custom_call.1} parent=1 // loop_exit
      _
    %299 = vsyncpa [#allocation3], 1
    %s300 = scalar_lea.sflag [#allocation3], 1
    %301 = vsyncpa %s300, 1
    %302 = vsyncpa [#allocation6], 1
    %s303 = scalar_lea.sflag [#allocation6], 1
    %304 = vsyncpa %s303, 1
    %305 = vsyncpa [#allocation4], 1
    %s306 = scalar_lea.sflag [#allocation4], 1
    %307 = vsyncpa %s306, 1

</llo_original>
